<compile_context>
chip_gen: v5e
topology: v5e:2x2
jax: 0.10.0
libtpu: 0.0.40
codegen_flags: <defaults>
</compile_context>

<pallas_src>
import functools

import jax
import jax.numpy as jnp
import numpy as np
from jax.experimental import pallas as pl
from jax.experimental.pallas import tpu as pltpu

BN_EPS = 1e-5


# --------------------------------------------------------------------------
# Hardware-aware configuration helpers.
# --------------------------------------------------------------------------
@functools.lru_cache(maxsize=None)
def _vmem_budget_bytes():
    """Generation-aware scoped-VMEM budget: ~100 MiB on 128-MiB chips
    (v5e/v6e), ~44 MiB on v7x (64 MiB physical) or if the query fails."""
    try:
        phys = int(pltpu.get_tpu_info().vmem_capacity_bytes)
    except Exception:
        phys = 64 << 20
    if phys >= (128 << 20):
        return 100 << 20
    return 44 << 20


_BUFFERED1_OK = None


def _buffered1_supported():
    """Probe once whether this build accepts pipeline_mode=pl.Buffered(1)
    (single-buffering of grid-constant blocks).  Falls back silently to the
    default double-buffering if unsupported."""
    global _BUFFERED1_OK
    if _BUFFERED1_OK is None:
        def _probe_kernel(x_ref, o_ref):
            o_ref[...] = x_ref[...] * 2.0

        try:
            f = pl.pallas_call(
                _probe_kernel,
                out_shape=jax.ShapeDtypeStruct((16, 128), jnp.float32),
                grid=(2,),
                in_specs=[pl.BlockSpec((8, 128), lambda i: (0, 0),
                                       pipeline_mode=pl.Buffered(1))],
                out_specs=pl.BlockSpec((8, 128), lambda i: (i, 0)),
            )
            jax.block_until_ready(f(jnp.zeros((8, 128), jnp.float32)))
            _BUFFERED1_OK = True
        except Exception:
            _BUFFERED1_OK = False
    return _BUFFERED1_OK


def _choose_stats_tile(n, two_h, budget):
    """Pass 1 is pure HBM streaming: target multi-MiB blocks per grid step,
    capped so the double-buffered x block uses <= ~1/4 of the VMEM budget."""
    per_row = 4 * two_h
    cap = max(256, (budget // 4) // (2 * per_row))
    t = min(4096, cap)
    t = max(8, (t // 8) * 8)
    return n if n <= t else t


def _choose_apply_tile(n, h, budget, w_resident_bytes):
    """Pass 2 keeps W (+ tiny stats/params) resident; size the row tile from
    the remainder: x tile (x2 buffers) + out tile (x2) + ~8 f32 temporaries."""
    avail = budget - w_resident_bytes - (4 << 20)
    per_row = 4 * (2 * (2 * h) + 2 * h + 8 * h)      # = 56*h bytes per row
    t = max(avail, per_row) // per_row
    t = max(128, min(2048, (t // 128) * 128))
    return n if n <= t else t


# --------------------------------------------------------------------------
# Kernel 1: per-column sum and sum-of-squares over the batch axis,
# accumulated into per-shard partials (leading "parallel" axis).
# --------------------------------------------------------------------------
def _stats_kernel(x_ref, sums_ref, *, n, stats_tile, tiles_total,
                  tiles_per_part, mask):
    p = pl.program_id(0)            # partial-sum shard (one per TC on v7x)
    i = pl.program_id(1)            # streaming step within the shard
    gt = p * tiles_per_part + i     # global tile id (may overhang tiles_total)

    @pl.when(i == 0)
    def _():
        sums_ref[...] = jnp.zeros_like(sums_ref)

    @pl.when(gt < tiles_total)      # skip the (at most one) padded dup tile
    def _():
        x = x_ref[...].astype(jnp.float32)               # (stats_tile, 2H)
        if mask:     # static: only emitted when stats_tile does not divide N
            rows = (jax.lax.broadcasted_iota(jnp.int32, x.shape, 0)
                    + gt * stats_tile)
            x = jnp.where(rows < n, x, 0.0)
        # Accumulate the two stats rows separately (no (2, 2H) temporary).
        sums_ref[0:1, :] += jnp.sum(x, axis=0, keepdims=True)
        sums_ref[1:2, :] += jnp.sum(x * x, axis=0, keepdims=True)


# --------------------------------------------------------------------------
# Kernel 2: normalize, shared-weight projection (two MXU matmuls), gating.
# --------------------------------------------------------------------------
def _apply_kernel(x_ref, stats_ref, params_ref, w_ref, o_ref, *, n, h,
                  num_parts, mm_dtype):
    # NOTE: rows are fully independent here (BN uses precomputed global stats
    # and the matmul contracts only over feature columns), so garbage rows
    # loaded for a ragged last tile only pollute their own OOB output rows,
    # which Pallas drops on writeback.  Do not add row-wise reductions here.
    x = x_ref[...].astype(jnp.float32)                   # (tile_n, 2H)
    u = x[:, :h]                                         # (tile_n, H)
    v = x[:, h:]                                         # (tile_n, H)

    # Combine the per-shard partial sums into global batch statistics.
    s = stats_ref[0]                                     # (2, 2H)
    for pidx in range(1, num_parts):
        s = s + stats_ref[pidx]
    inv_n = np.float32(1.0 / n)
    mean = s[0:1, :] * inv_n                             # (1, 2H)
    # Biased (train-mode) variance; clamp against f32 cancellation -> NaN.
    var = jnp.maximum(s[1:2, :] * inv_n - mean * mean, 0.0)
    inv_std = jax.lax.rsqrt(var + np.float32(BN_EPS))

    mean_u, mean_v = mean[:, :h], mean[:, h:]
    istd_u, istd_v = inv_std[:, :h], inv_std[:, h:]

    prm = params_ref[...]                                # (5, H) packed
    g1, b1 = prm[0:1, :], prm[1:2, :]
    g2, b2 = prm[2:3, :], prm[3:4, :]
    bl = prm[4:5, :]

    a = (v - mean_v) * istd_v * g1 + b1                  # BN1(v)
    b = (u - mean_u) * istd_u * g2 + b2                  # BN2(u)

    # Shared spatial_proj weight stays resident; contract on W's dim 1
    # (== x @ W.T) so the wrapper never materializes w.T.  Two dot_generals
    # instead of a concatenate + slice (no extra (2*tile_n, H) VMEM copy).
    w_op = w_ref[...]                                    # (H, H), pre-cast
    dn = (((1,), (1,)), ((), ()))
    pa = jax.lax.dot_general(a.astype(mm_dtype), w_op, dimension_numbers=dn,
                             preferred_element_type=jnp.float32) + bl
    pb = jax.lax.dot_general(b.astype(mm_dtype), w_op, dimension_numbers=dn,
                             preferred_element_type=jnp.float32) + bl

    o_ref[...] = (u * pa + v * pb).astype(o_ref.dtype)


# --------------------------------------------------------------------------
# Jitted implementation (all tiling decisions are static arguments).
# --------------------------------------------------------------------------
@functools.partial(
    jax.jit,
    static_argnames=("tile_n", "stats_tile", "mm_dtype", "vmem_limit",
                     "single_buffer_consts"))
def _sgu_impl(x, gamma1, beta1, gamma2, beta2, w, b_lin, *, tile_n,
              stats_tile, mm_dtype, vmem_limit, single_buffer_consts):
    n, two_h = x.shape
    h = two_h // 2

    # ---- Pass 1: global BN statistics (pure HBM streaming, big tiles) ----
    tiles_total = pl.cdiv(n, stats_tile)
    # Two partial-sum shards let the v7x megacore stream HBM with both
    # TensorCores; on 1-TC chips the extra shard just runs sequentially.
    num_parts = 2 if tiles_total >= 2 else 1
    tiles_per_part = pl.cdiv(tiles_total, num_parts)
    stats_mask = (n % stats_tile) != 0

    def stats_x_map(p, i):
        # Clamp the (at most one) padded duplicate tile back in bounds; the
        # kernel skips its contribution via `gt < tiles_total`.
        return (jnp.minimum(p * tiles_per_part + i, tiles_total - 1), 0)

    sums = pl.pallas_call(
        functools.partial(_stats_kernel, n=n, stats_tile=stats_tile,
                          tiles_total=tiles_total,
                          tiles_per_part=tiles_per_part, mask=stats_mask),
        out_shape=jax.ShapeDtypeStruct((num_parts, 2, two_h), jnp.float32),
        grid=(num_parts, tiles_per_part),
        in_specs=[pl.BlockSpec((stats_tile, two_h), stats_x_map)],
        out_specs=pl.BlockSpec((None, 2, two_h), lambda p, i: (p, 0, 0)),
        compiler_params=pltpu.CompilerParams(
            dimension_semantics=("parallel", "arbitrary"),
            vmem_limit_bytes=vmem_limit),
    )(x)

    # ---- Pass 2: normalize + shared projection + gating (tiles independent) -
    params = jnp.stack([gamma1, beta1, gamma2, beta2, b_lin], axis=0)  # (5, H)
    w_op = w.astype(mm_dtype)          # cast once here, never per grid step

    def const_spec(shape):
        zeros = (0,) * len(shape)
        if single_buffer_consts:
            return pl.BlockSpec(shape, lambda i, _z=zeros: _z,
                                pipeline_mode=pl.Buffered(1))
        return pl.BlockSpec(shape, lambda i, _z=zeros: _z)

    num_tiles = pl.cdiv(n, tile_n)
    out = pl.pallas_call(
        functools.partial(_apply_kernel, n=n, h=h, num_parts=num_parts,
                          mm_dtype=mm_dtype),
        out_shape=jax.ShapeDtypeStruct((n, h), x.dtype),
        grid=(num_tiles,),
        in_specs=[
            pl.BlockSpec((tile_n, two_h), lambda i: (i, 0)),   # x = [u | v]
            const_spec((num_parts, 2, two_h)),                 # BN partials
            const_spec((5, h)),                                # packed params
            const_spec((h, h)),                                # shared W
        ],
        out_specs=pl.BlockSpec((tile_n, h), lambda i: (i, 0)),
        compiler_params=pltpu.CompilerParams(
            dimension_semantics=("parallel",),
            vmem_limit_bytes=vmem_limit),
    )(x, sums, params, w_op)
    return out


def spatial_gating_unit(x, gamma1, beta1, gamma2, beta2, w, b_lin, *,
                        matmul_dtype=None, tile_n=None, stats_tile=None):
    """x: (N, 2H) float32.  Returns (N, H) float32 (train-mode forward)."""
    n, two_h = x.shape
    h = two_h // 2
    budget = _vmem_budget_bytes()
    single_buffer_consts = _buffered1_supported()

    if matmul_dtype is None:
        # The op is HBM-bound until H reaches ~1e3 on current generations;
        # stay PyTorch-faithful f32 below that.  bf16 operands (f32 accumulate)
        # only where they pay in MXU time + halved resident-W footprint.
        matmul_dtype = jnp.bfloat16 if h >= 1024 else jnp.float32
    mm_dtype = np.dtype(matmul_dtype)

    w_resident = h * h * mm_dtype.itemsize * (1 if single_buffer_consts else 2)

    if stats_tile is None:
        stats_tile = _choose_stats_tile(n, two_h, budget)
    else:
        stats_tile = min(int(stats_tile), n)
        if stats_tile < n:
            stats_tile = max(8, (stats_tile // 8) * 8)

    if tile_n is None:
        tile_n = _choose_apply_tile(n, h, budget, w_resident)
    else:
        tile_n = min(int(tile_n), n)
        if tile_n < n:
            tile_n = max(8, (tile_n // 8) * 8)

    return _sgu_impl(x, gamma1, beta1, gamma2, beta2, w, b_lin,
                     tile_n=tile_n, stats_tile=stats_tile, mm_dtype=mm_dtype,
                     vmem_limit=budget,
                     single_buffer_consts=single_buffer_consts)


def _reference(x, gamma1, beta1, gamma2, beta2, w, b_lin,
               matmul_dtype=jnp.float32):
    """Pure-JAX reference of the PyTorch forward (train-mode BatchNorm1d)."""
    h = x.shape[-1] // 2
    u, v = x[:, :h], x[:, h:]

    def bn(t, g, b):
        mean = jnp.mean(t, axis=0, keepdims=True)
        var = jnp.mean((t - mean) ** 2, axis=0, keepdims=True)
        return (t - mean) / jnp.sqrt(var + BN_EPS) * g + b

    def proj(t):
        return jnp.dot(t.astype(matmul_dtype), w.astype(matmul_dtype).T,
                       preferred_element_type=jnp.float32) + b_lin

    out_1 = u * proj(bn(v, gamma1, beta1))
    out_2 = v * proj(bn(u, gamma2, beta2))
    return out_1 + out_2


if __name__ == "__main__":
    def make_inputs(key, batch, hid):
        ks = jax.random.split(key, 7)
        x = jax.random.normal(ks[0], (batch, 2 * hid), dtype=jnp.float32)
        gamma1 = 1.0 + 0.1 * jax.random.normal(ks[1], (hid,), jnp.float32)
        beta1 = 0.1 * jax.random.normal(ks[2], (hid,), jnp.float32)
        gamma2 = 1.0 + 0.1 * jax.random.normal(ks[3], (hid,), jnp.float32)
        beta2 = 0.1 * jax.random.normal(ks[4], (hid,), jnp.float32)
        bound = 1.0 / np.sqrt(hid)
        w = jax.random.uniform(ks[5], (hid, hid), jnp.float32,
                               minval=-bound, maxval=bound)
        b_lin = jax.random.uniform(ks[6], (hid,), jnp.float32,
                                   minval=-bound, maxval=bound)
        return x, gamma1, beta1, gamma2, beta2, w, b_lin

    key = jax.random.PRNGKey(0)
    k1, k2 = jax.random.split(key)

    # Case 1: small module-consistent shapes (hid_feats=32 -> x last dim 64).
    # Single tile on both passes, f32 matmul path; tight tolerance vs f32 ref.
    args = make_inputs(k1, batch=8, hid=32)
    out = jax.block_until_ready(spatial_gating_unit(*args))
    ref = _reference(*args)
    np.testing.assert_allclose(np.asarray(out), np.asarray(ref),
                               rtol=1e-4, atol=1e-4)

    # Case 2: exercises the 2-shard stats pass with a ragged, clamped last
    # tile (400 rows / 192-row stats tiles) and the multi-tile ragged apply
    # pass (128-row tiles).  f32 matmul path (PyTorch-faithful default).
    args2 = make_inputs(k2, batch=400, hid=256)
    out2 = jax.block_until_ready(
        spatial_gating_unit(*args2, tile_n=128, stats_tile=192))
    ref2 = _reference(*args2)
    np.testing.assert_allclose(np.asarray(out2), np.asarray(ref2),
                               rtol=5e-3, atol=5e-3)

    print("KERNEL_OK")
</pallas_src>

<mosaic_0001>
module attributes {stable_mosaic.version = 11 : i64} {
  func.func @_probe_kernel(%arg0: i32, %arg1: memref<8x128xf32, #tpu.memory_space<vmem>>, %arg2: memref<8x128xf32, #tpu.memory_space<vmem>>) attributes {dimension_semantics = [#tpu.dimension_semantics<arbitrary>], iteration_bounds = array<i64: 2>, scalar_prefetch = 0 : i64, scratch_operands = 0 : i64, tpu.core_type = #tpu.core_type<tc>, window_params = [{pipeline_mode = #tpu.pipeline_mode<synchronous>, transform_indices = @transform_0, window_bounds = array<i64: 8, 128>}, {transform_indices = @transform_1, window_bounds = array<i64: 8, 128>}]} {
    %c0 = arith.constant 0 : index
    %c0_0 = arith.constant 0 : index
    %0 = vector.load %arg1[%c0, %c0_0] : memref<8x128xf32, #tpu.memory_space<vmem>>, vector<8x128xf32>
    %cst = arith.constant 2.000000e+00 : f32
    %1 = vector.broadcast %cst : f32 to vector<8x128xf32>
    %2 = arith.mulf %0, %1 : vector<8x128xf32>
    %c0_1 = arith.constant 0 : index
    %c0_2 = arith.constant 0 : index
    %3 = vector.load %arg2[%c0_1, %c0_2] : memref<8x128xf32, #tpu.memory_space<vmem>>, vector<8x128xf32>
    tpu.vector_store %arg2[%c0_1, %c0_2], %2 {strides = array<i32>} : memref<8x128xf32, #tpu.memory_space<vmem>>, vector<8x128xf32>,
    return
  }
  func.func @transform_0(%arg0: i32) -> (i32, i32) {
    %c0_i32 = arith.constant 0 : i32
    %c0_i32_0 = arith.constant 0 : i32
    %c0_i32_1 = arith.constant 0 : i32
    return %c0_i32, %c0_i32_0 : i32, i32
  }
  func.func @transform_1(%arg0: i32) -> (i32, i32) {
    %c0_i32 = arith.constant 0 : i32
    %c0_i32_0 = arith.constant 0 : i32
    return %arg0, %c0_i32 : i32, i32
  }
}

module attributes {stable_mosaic.version = 11 : i64} {
  func.func @_stats_kernel(%arg0: i32, %arg1: i32, %arg2: memref<8x64xf32, #tpu.memory_space<vmem>>, %arg3: memref<1x2x64xf32, #tpu.memory_space<vmem>>) attributes {dimension_semantics = [#tpu.dimension_semantics<parallel>, #tpu.dimension_semantics<arbitrary>], iteration_bounds = array<i64: 1, 1>, scalar_prefetch = 0 : i64, scratch_operands = 0 : i64, tpu.core_type = #tpu.core_type<tc>, window_params = [{transform_indices = @transform_0, window_bounds = array<i64: 8, 64>}, {transform_indices = @transform_1, window_bounds = array<i64: 1, 2, 64>}]} {
    %c1_i32 = arith.constant 1 : i32
    %0 = arith.muli %arg0, %c1_i32 : i32
    %1 = arith.addi %0, %arg1 : i32
    %c0_i32 = arith.constant 0 : i32
    %2 = arith.cmpi eq, %arg1, %c0_i32 : i32
    %3 = arith.extui %2 : i1 to i32
    %c0_i32_0 = arith.constant 0 : i32
    %4 = arith.cmpi ne, %3, %c0_i32_0 : i32
    scf.if %4 {
      %cst = arith.constant 0.000000e+00 : f32
      %8 = vector.broadcast %cst : f32 to vector<2x64xf32>
      %c0 = arith.constant 0 : index
      %c0_3 = arith.constant 0 : index
      %c0_4 = arith.constant 0 : index
      %9 = vector.load %arg3[%c0, %c0_3, %c0_4] : memref<1x2x64xf32, #tpu.memory_space<vmem>>, vector<1x2x64xf32>
      %10 = vector.shape_cast %9 : vector<1x2x64xf32> to vector<2x64xf32>
      %11 = vector.shape_cast %8 : vector<2x64xf32> to vector<1x2x64xf32>
      tpu.vector_store %arg3[%c0, %c0_3, %c0_4], %11 {strides = array<i32>} : memref<1x2x64xf32, #tpu.memory_space<vmem>>, vector<1x2x64xf32>,
    } else {
    }
    %c1_i32_1 = arith.constant 1 : i32
    %5 = arith.cmpi slt, %1, %c1_i32_1 : i32
    %6 = arith.extui %5 : i1 to i32
    %c0_i32_2 = arith.constant 0 : i32
    %7 = arith.cmpi ne, %6, %c0_i32_2 : i32
    scf.if %7 {
      %c0 = arith.constant 0 : index
      %c0_3 = arith.constant 0 : index
      %8 = vector.load %arg2[%c0, %c0_3] : memref<8x64xf32, #tpu.memory_space<vmem>>, vector<8x64xf32>
      %c0_4 = arith.constant 0 : index
      %c0_5 = arith.constant 0 : index
      %c0_6 = arith.constant 0 : index
      %9 = vector.load %arg3[%c0_4, %c0_5, %c0_6] : memref<1x2x64xf32, #tpu.memory_space<vmem>>, vector<1x1x64xf32>
      %10 = vector.shape_cast %9 : vector<1x1x64xf32> to vector<1x64xf32>
      %cst = arith.constant dense<0.000000e+00> : vector<64xf32>
      %11 = vector.multi_reduction <add>, %8, %cst [0] : vector<8x64xf32> to vector<64xf32>
      %12 = vector.shape_cast %11 : vector<64xf32> to vector<1x64xf32>
      %13 = arith.addf %10, %12 : vector<1x64xf32>
      %c0_7 = arith.constant 0 : index
      %c0_8 = arith.constant 0 : index
      %c0_9 = arith.constant 0 : index
      %14 = vector.load %arg3[%c0_7, %c0_8, %c0_9] : memref<1x2x64xf32, #tpu.memory_space<vmem>>, vector<1x1x64xf32>
      %15 = vector.shape_cast %14 : vector<1x1x64xf32> to vector<1x64xf32>
      %16 = vector.shape_cast %13 : vector<1x64xf32> to vector<1x1x64xf32>
      tpu.vector_store %arg3[%c0_7, %c0_8, %c0_9], %16 {strides = array<i32>} : memref<1x2x64xf32, #tpu.memory_space<vmem>>, vector<1x1x64xf32>,
      %c0_10 = arith.constant 0 : index
      %c1 = arith.constant 1 : index
      %c0_11 = arith.constant 0 : index
      %17 = vector.load %arg3[%c0_10, %c1, %c0_11] : memref<1x2x64xf32, #tpu.memory_space<vmem>>, vector<1x1x64xf32>
      %18 = vector.shape_cast %17 : vector<1x1x64xf32> to vector<1x64xf32>
      %19 = arith.mulf %8, %8 : vector<8x64xf32>
      %cst_12 = arith.constant dense<0.000000e+00> : vector<64xf32>
      %20 = vector.multi_reduction <add>, %19, %cst_12 [0] : vector<8x64xf32> to vector<64xf32>
      %21 = vector.shape_cast %20 : vector<64xf32> to vector<1x64xf32>
      %22 = arith.addf %18, %21 : vector<1x64xf32>
      %c0_13 = arith.constant 0 : index
      %c1_14 = arith.constant 1 : index
      %c0_15 = arith.constant 0 : index
      %23 = vector.load %arg3[%c0_13, %c1_14, %c0_15] : memref<1x2x64xf32, #tpu.memory_space<vmem>>, vector<1x1x64xf32>
      %24 = vector.shape_cast %23 : vector<1x1x64xf32> to vector<1x64xf32>
      %25 = vector.shape_cast %22 : vector<1x64xf32> to vector<1x1x64xf32>
      tpu.vector_store %arg3[%c0_13, %c1_14, %c0_15], %25 {strides = array<i32>} : memref<1x2x64xf32, #tpu.memory_space<vmem>>, vector<1x1x64xf32>,
    } else {
    }
    return
  }
  func.func @transform_0(%arg0: i32, %arg1: i32) -> (i32, i32) {
    %c1_i32 = arith.constant 1 : i32
    %0 = arith.muli %arg0, %c1_i32 : i32
    %1 = arith.addi %0, %arg1 : i32
    %c0_i32 = arith.constant 0 : i32
    %2 = arith.minsi %1, %c0_i32 : i32
    %c0_i32_0 = arith.constant 0 : i32
    %c0_i32_1 = arith.constant 0 : i32
    return %2, %c0_i32_0 : i32, i32
  }
  func.func @transform_1(%arg0: i32, %arg1: i32) -> (i32, i32, i32) {
    %c0_i32 = arith.constant 0 : i32
    %c0_i32_0 = arith.constant 0 : i32
    %c0_i32_1 = arith.constant 0 : i32
    return %arg0, %c0_i32, %c0_i32_0 : i32, i32, i32
  }
}

module attributes {stable_mosaic.version = 11 : i64} {
  func.func @_apply_kernel(%arg0: i32, %arg1: memref<8x64xf32, #tpu.memory_space<vmem>>, %arg2: memref<1x2x64xf32, #tpu.memory_space<vmem>>, %arg3: memref<5x32xf32, #tpu.memory_space<vmem>>, %arg4: memref<32x32xf32, #tpu.memory_space<vmem>>, %arg5: memref<8x32xf32, #tpu.memory_space<vmem>>) attributes {dimension_semantics = [#tpu.dimension_semantics<parallel>], iteration_bounds = array<i64: 1>, scalar_prefetch = 0 : i64, scratch_operands = 0 : i64, tpu.core_type = #tpu.core_type<tc>, window_params = [{transform_indices = @transform_0, window_bounds = array<i64: 8, 64>}, {pipeline_mode = #tpu.pipeline_mode<synchronous>, transform_indices = @transform_1, window_bounds = array<i64: 1, 2, 64>}, {pipeline_mode = #tpu.pipeline_mode<synchronous>, transform_indices = @transform_2, window_bounds = array<i64: 5, 32>}, {pipeline_mode = #tpu.pipeline_mode<synchronous>, transform_indices = @transform_3, window_bounds = array<i64: 32, 32>}, {transform_indices = @transform_4, window_bounds = array<i64: 8, 32>}]} {
    %c0 = arith.constant 0 : index
    %c0_0 = arith.constant 0 : index
    %0 = vector.load %arg1[%c0, %c0_0] : memref<8x64xf32, #tpu.memory_space<vmem>>, vector<8x64xf32>
    %1 = vector.extract_strided_slice %0 {offsets = [0, 0], sizes = [8, 32], strides = [1, 1]} : vector<8x64xf32> to vector<8x32xf32>
    %2 = vector.extract_strided_slice %0 {offsets = [0, 32], sizes = [8, 32], strides = [1, 1]} : vector<8x64xf32> to vector<8x32xf32>
    %c0_1 = arith.constant 0 : index
    %c0_2 = arith.constant 0 : index
    %c0_3 = arith.constant 0 : index
    %3 = vector.load %arg2[%c0_1, %c0_2, %c0_3] : memref<1x2x64xf32, #tpu.memory_space<vmem>>, vector<1x2x64xf32>
    %4 = vector.shape_cast %3 : vector<1x2x64xf32> to vector<2x64xf32>
    %5 = vector.extract_strided_slice %4 {offsets = [0, 0], sizes = [1, 64], strides = [1, 1]} : vector<2x64xf32> to vector<1x64xf32>
    %cst = arith.constant 1.250000e-01 : f32
    %6 = vector.broadcast %cst : f32 to vector<1x64xf32>
    %7 = arith.mulf %5, %6 : vector<1x64xf32>
    %8 = vector.extract_strided_slice %4 {offsets = [1, 0], sizes = [1, 64], strides = [1, 1]} : vector<2x64xf32> to vector<1x64xf32>
    %cst_4 = arith.constant 1.250000e-01 : f32
    %9 = vector.broadcast %cst_4 : f32 to vector<1x64xf32>
    %10 = arith.mulf %8, %9 : vector<1x64xf32>
    %11 = arith.mulf %7, %7 : vector<1x64xf32>
    %12 = arith.subf %10, %11 : vector<1x64xf32>
    %cst_5 = arith.constant 0.000000e+00 : f32
    %13 = vector.broadcast %cst_5 : f32 to vector<1x64xf32>
    %14 = arith.maximumf %12, %13 : vector<1x64xf32>
    %cst_6 = arith.constant 9.99999974E-6 : f32
    %15 = vector.broadcast %cst_6 : f32 to vector<1x64xf32>
    %16 = arith.addf %14, %15 : vector<1x64xf32>
    %17 = math.rsqrt %16 : vector<1x64xf32>
    %18 = vector.extract_strided_slice %7 {offsets = [0, 0], sizes = [1, 32], strides = [1, 1]} : vector<1x64xf32> to vector<1x32xf32>
    %19 = vector.extract_strided_slice %7 {offsets = [0, 32], sizes = [1, 32], strides = [1, 1]} : vector<1x64xf32> to vector<1x32xf32>
    %20 = vector.extract_strided_slice %17 {offsets = [0, 0], sizes = [1, 32], strides = [1, 1]} : vector<1x64xf32> to vector<1x32xf32>
    %21 = vector.extract_strided_slice %17 {offsets = [0, 32], sizes = [1, 32], strides = [1, 1]} : vector<1x64xf32> to vector<1x32xf32>
    %c0_7 = arith.constant 0 : index
    %c0_8 = arith.constant 0 : index
    %22 = vector.load %arg3[%c0_7, %c0_8] : memref<5x32xf32, #tpu.memory_space<vmem>>, vector<5x32xf32>
    %23 = vector.extract_strided_slice %22 {offsets = [0, 0], sizes = [1, 32], strides = [1, 1]} : vector<5x32xf32> to vector<1x32xf32>
    %24 = vector.extract_strided_slice %22 {offsets = [1, 0], sizes = [1, 32], strides = [1, 1]} : vector<5x32xf32> to vector<1x32xf32>
    %25 = vector.extract_strided_slice %22 {offsets = [2, 0], sizes = [1, 32], strides = [1, 1]} : vector<5x32xf32> to vector<1x32xf32>
    %26 = vector.extract_strided_slice %22 {offsets = [3, 0], sizes = [1, 32], strides = [1, 1]} : vector<5x32xf32> to vector<1x32xf32>
    %27 = vector.extract_strided_slice %22 {offsets = [4, 0], sizes = [1, 32], strides = [1, 1]} : vector<5x32xf32> to vector<1x32xf32>
    %28 = vector.broadcast %19 : vector<1x32xf32> to vector<8x32xf32>
    %29 = arith.subf %2, %28 : vector<8x32xf32>
    %30 = vector.broadcast %21 : vector<1x32xf32> to vector<8x32xf32>
    %31 = arith.mulf %29, %30 : vector<8x32xf32>
    %32 = vector.broadcast %23 : vector<1x32xf32> to vector<8x32xf32>
    %33 = arith.mulf %31, %32 : vector<8x32xf32>
    %34 = vector.broadcast %24 : vector<1x32xf32> to vector<8x32xf32>
    %35 = arith.addf %33, %34 : vector<8x32xf32>
    %36 = vector.broadcast %18 : vector<1x32xf32> to vector<8x32xf32>
    %37 = arith.subf %1, %36 : vector<8x32xf32>
    %38 = vector.broadcast %20 : vector<1x32xf32> to vector<8x32xf32>
    %39 = arith.mulf %37, %38 : vector<8x32xf32>
    %40 = vector.broadcast %25 : vector<1x32xf32> to vector<8x32xf32>
    %41 = arith.mulf %39, %40 : vector<8x32xf32>
    %42 = vector.broadcast %26 : vector<1x32xf32> to vector<8x32xf32>
    %43 = arith.addf %41, %42 : vector<8x32xf32>
    %c0_9 = arith.constant 0 : index
    %c0_10 = arith.constant 0 : index
    %44 = vector.load %arg4[%c0_9, %c0_10] : memref<32x32xf32, #tpu.memory_space<vmem>>, vector<32x32xf32>
    %cst_11 = arith.constant dense<0.000000e+00> : vector<8x32xf32>
    %45 = tpu.matmul %35, %44, %cst_11 {dimension_numbers = #tpu.dot_dimension_numbers<[1], [1], [0], [0], [0, 0, 1, 0], [], []>} : vector<8x32xf32>, vector<32x32xf32>, vector<8x32xf32> -> vector<8x32xf32>
    %46 = vector.broadcast %27 : vector<1x32xf32> to vector<8x32xf32>
    %47 = arith.addf %45, %46 : vector<8x32xf32>
    %cst_12 = arith.constant dense<0.000000e+00> : vector<8x32xf32>
    %48 = tpu.matmul %43, %44, %cst_12 {dimension_numbers = #tpu.dot_dimension_numbers<[1], [1], [0], [0], [0, 0, 1, 0], [], []>} : vector<8x32xf32>, vector<32x32xf32>, vector<8x32xf32> -> vector<8x32xf32>
    %49 = vector.broadcast %27 : vector<1x32xf32> to vector<8x32xf32>
    %50 = arith.addf %48, %49 : vector<8x32xf32>
    %51 = arith.mulf %1, %47 : vector<8x32xf32>
    %52 = arith.mulf %2, %50 : vector<8x32xf32>
    %53 = arith.addf %51, %52 : vector<8x32xf32>
    %c0_13 = arith.constant 0 : index
    %c0_14 = arith.constant 0 : index
    %54 = vector.load %arg5[%c0_13, %c0_14] : memref<8x32xf32, #tpu.memory_space<vmem>>, vector<8x32xf32>
    tpu.vector_store %arg5[%c0_13, %c0_14], %53 {strides = array<i32>} : memref<8x32xf32, #tpu.memory_space<vmem>>, vector<8x32xf32>,
    return
  }
  func.func @transform_0(%arg0: i32) -> (i32, i32) {
    %c0_i32 = arith.constant 0 : i32
    %c0_i32_0 = arith.constant 0 : i32
    return %arg0, %c0_i32 : i32, i32
  }
  func.func @transform_1(%arg0: i32) -> (i32, i32, i32) {
    %c0_i32 = arith.constant 0 : i32
    %c0_i32_0 = arith.constant 0 : i32
    %c0_i32_1 = arith.constant 0 : i32
    %c0_i32_2 = arith.constant 0 : i32
    return %c0_i32, %c0_i32_0, %c0_i32_1 : i32, i32, i32
  }
  func.func @transform_2(%arg0: i32) -> (i32, i32) {
    %c0_i32 = arith.constant 0 : i32
    %c0_i32_0 = arith.constant 0 : i32
    %c0_i32_1 = arith.constant 0 : i32
    return %c0_i32, %c0_i32_0 : i32, i32
  }
  func.func @transform_3(%arg0: i32) -> (i32, i32) {
    %c0_i32 = arith.constant 0 : i32
    %c0_i32_0 = arith.constant 0 : i32
    %c0_i32_1 = arith.constant 0 : i32
    return %c0_i32, %c0_i32_0 : i32, i32
  }
  func.func @transform_4(%arg0: i32) -> (i32, i32) {
    %c0_i32 = arith.constant 0 : i32
    %c0_i32_0 = arith.constant 0 : i32
    return %arg0, %c0_i32 : i32, i32
  }
}

</mosaic_0001>

<llo_original>
// kernel: tpu_custom_call.1
$region0: #{tpu_custom_call.1}
  #allocation0 [shape = 'u32[]', space=smem, size = 0x4, offset = 0x4, fixed_abs, tag = 'smem constant byte address 0x4 - core index']
  #allocation1 [shape = 'u32[72,128]{1,0:T(1,128)}', space=vmem, size = 0x9000, scoped, tag = 'internal scratch']
  %s0 = inlined_call_operand.hbm [shape: f32[8,128], index: 0, kind: input, shape index: {}]
  %s1 = inlined_call_operand.hbm [shape: f32[16,128], index: 1, kind: output, shape index: {}]
  %s2 = sld [smem:[#allocation0]]
  $region41: #{tpu_custom_call.1} parent=0
    _
  %s4 = ssub.s32 1, %s2
  %s5 = scalar_select 0, %s4, %s2
  $region1: #{tpu_custom_call.1} parent=0
    #allocation2 [shape = 'u8[4096]{0}', space=vmem, size = 0x1000, scoped, tag = 'input window, operand 0, single buffered']
    #allocation3 [shape = 's32[2]{0}', space=sflag, size = 0x8, scoped, tag = 'scoped memory for tpu_custom_call.1']
    #allocation4 [shape = 's32[2]{0}', space=sflag, size = 0x8, scoped, tag = 'scoped memory for tpu_custom_call.1']
    #allocation5 [shape = 'u8[8192]{0}', space=vmem, size = 0x2000, scoped, tag = 'output window, operand 0']
    %6 = vsyncpa [#allocation3], 0
    %7 = vsyncpa [#allocation4], 0
    %s8 = scalar_lea.sflag [#allocation4], 1
    %9 = vsyncpa %s8, 0
    loop: start=0, step=1, limit=4
    $region2: #{tpu_custom_call.1} parent=1 // loop_pre_header
      _
    $region3: #{tpu_custom_call.1} parent=1 // loop_header
      %s11 = sphi 0, %s15
      %p12 = scmp.ge.s32.totalorder %s11, 4
      %s19 = sphi 0, %s19
      %s21 = sphi 0, %s19
      %s22 = sphi 0, %s21
      %s36 = sphi 0, %s22
      %s42 = sphi 0, %s44
      %s45 = sphi 0, %s42
      %s46 = sphi 0, %s45
      %s62 = sphi 0, %s46
    $region4: #{tpu_custom_call.1} parent=1 // loop_header_branch
      %14 = sbr.rel (%p12) target = $region8
    $region5: #{tpu_custom_call.1} parent=1 // loop_body
      %s16 = ssub.s32 %s11, 1
      %s17 = ssub.s32 %s11, 2
      %s18 = sadd.s32 %s11, 1
      %s20 = sadd.s32 %s19, 1
      %p23 = scmp.eq.s32.totalorder %s11, 1
      %p24 = scmp.ne.s32.totalorder %s19, %s21
      %p25 = scmp.eq.s32.totalorder %s11, 0
      %p26 = por %p24, %p25
      %p27 = scmp.ne.s32.totalorder %s19, %s21
      %p28 = scmp.eq.s32.totalorder %s16, 1
      %p29 = por %p27, %p28
      %p30 = scmp.ne.s32.totalorder %s21, %s22
      %p31 = scmp.eq.s32.totalorder %s16, 0
      %p32 = por %p30, %p31
      %p33 = scmp.ne.s32.totalorder %s21, %s22
      %p34 = scmp.eq.s32.totalorder %s17, 1
      %p35 = por %p33, %p34
      %p37 = scmp.ne.s32.totalorder %s22, %s36
      %p38 = scmp.eq.s32.totalorder %s17, 0
      %p39 = por %p37, %p38
      %s40 = ssub.s32 %s11, %s18
      %p41 = scmp.eq.s32.totalorder %s40, 0
      %s43 = sadd.s32 %s42, 1
      %s44 = scalar_select %p41, %s42, %s43
      %p47 = pneg %p41
      %p48 = scmp.eq.s32.totalorder %s11, 1
      %p49 = por %p47, %p48
      %p50 = scmp.ne.s32.totalorder %s42, %s45
      %p51 = scmp.eq.s32.totalorder %s11, 0
      %p52 = por %p50, %p51
      %p53 = scmp.ne.s32.totalorder %s42, %s45
      %p54 = scmp.eq.s32.totalorder %s16, 1
      %p55 = por %p53, %p54
      %p56 = scmp.ne.s32.totalorder %s45, %s46
      %p57 = scmp.eq.s32.totalorder %s16, 0
      %p58 = por %p56, %p57
      %p59 = scmp.ne.s32.totalorder %s45, %s46
      %p60 = scmp.eq.s32.totalorder %s17, 1
      %p61 = por %p59, %p60
      %p63 = scmp.ne.s32.totalorder %s46, %s62
      %p64 = scmp.eq.s32.totalorder %s17, 0
      %p65 = por %p63, %p64
      %p66 = scmp.le.s32.totalorder 1, %s11
      %p67 = scmp.lt.s32.totalorder %s11, 3
      %p68 = pnand %p66, %p67
      %p69 = pneg %p68
      // Predicated region
      $region9: #{tpu_custom_call.1} parent=5 // pred_check
        _
      $region10: #{tpu_custom_call.1} parent=5 // pred_check_branch
        %71 = sbr.rel (%p68) target = $region12
      $region11: #{tpu_custom_call.1} parent=5 // pred_region
        %s72 = ssub.s32 %s11, 1
        // Predicated region
        $region13: #{tpu_custom_call.1} parent=11 // pred_check
          %p73 = pneg %p32
        $region14: #{tpu_custom_call.1} parent=11 // pred_check_branch
          %75 = sbr.rel (%p73) target = $region16
        $region15: #{tpu_custom_call.1} parent=11 // pred_region
          %77 = vsyncadd [#allocation3], 0
          %s79 = sshll.u32 %s0, 4
          %s80 = int_to_ptr.hbm [resolvable:$true] %s79
          %s81 = sshll.u32 [#allocation2], 4
          %s82 = int_to_ptr.vmem [resolvable:$true] %s81
          %84 = dma.hbm_to_vmem [thread:$0]  %s80, 128, %s82, [#allocation3]
        $region16: #{tpu_custom_call.1} parent=11 // pred_fallthru
          _
      $region12: #{tpu_custom_call.1} parent=5 // pred_fallthru
        _
      %p85 = scmp.lt.s32.totalorder %s11, 2
      // Predicated region
      $region17: #{tpu_custom_call.1} parent=5 // pred_check
        %p86 = pneg %p85
      $region18: #{tpu_custom_call.1} parent=5 // pred_check_branch
        %88 = sbr.rel (%p86) target = $region20
      $region19: #{tpu_custom_call.1} parent=5 // pred_region
        _
      $region20: #{tpu_custom_call.1} parent=5 // pred_fallthru
        _
      %p89 = scmp.le.s32.totalorder 1, %s11
      %p90 = scmp.lt.s32.totalorder %s11, 3
      %p91 = pnand %p89, %p90
      %p92 = pneg %p91
      // Predicated region
      $region21: #{tpu_custom_call.1} parent=5 // pred_check
        _
      $region22: #{tpu_custom_call.1} parent=5 // pred_check_branch
        %94 = sbr.rel (%p91) target = $region24
      $region23: #{tpu_custom_call.1} parent=5 // pred_region
        %s95 = ssub.s32 %s11, 1
        // Predicated region
        $region25: #{tpu_custom_call.1} parent=23 // pred_check
          %p96 = pneg %p32
        $region26: #{tpu_custom_call.1} parent=23 // pred_check_branch
          %98 = sbr.rel (%p96) target = $region28
        $region27: #{tpu_custom_call.1} parent=23 // pred_region
          %100 = dma.done [#allocation3], 128
        $region28: #{tpu_custom_call.1} parent=23 // pred_fallthru
          _
        %p101 = pneg %p32
        %p102 = pneg %p29
        %p103 = pneg %p58
        %p104 = pneg %p55
        %s105 = sand.u32 %s45, 1
        %s106 = scalar_lea.sflag [#allocation4], %s105
        %s107 = sand.u32 %s45, 1
        %s108 = smul.addr %s107, 8
        %s109 = scalar_lea.vmem [#allocation5], %s108
        %v110 = vld [vmem:[#allocation2] sm:$0xff]
        %v111 = vmul.f32 %v110, 2.0
        %112 = vst [vmem:[%s109] sm:$0xff] %v111
        %s113 = sand.u32 %s45, 1
        %s114 = scalar_lea.sflag [#allocation4], %s113
        %s115 = sand.u32 %s45, 1
        %s116 = smul.addr %s115, 8
        %s117 = scalar_lea.vmem [#allocation5], %s116
        // Predicated region
        $region29: #{tpu_custom_call.1} parent=23 // pred_check
          %p118 = pneg %p55
        $region30: #{tpu_custom_call.1} parent=23 // pred_check_branch
          %120 = sbr.rel (%p118) target = $region32
        $region31: #{tpu_custom_call.1} parent=23 // pred_region
          %122 = vsyncadd %s114, 0
          %s123 = smul.addr %s16, 8
          %s124 = scalar_lea.hbm %s1, %s123
          %s126 = sshll.u32 %s117, 4
          %s127 = int_to_ptr.vmem [resolvable:$true] %s126
          %s128 = sshll.u32 %s124, 4
          %s129 = int_to_ptr.hbm [resolvable:$true] %s128
          %131 = dma.vmem_to_hbm [thread:$0]  %s127, 128, %s129, %s114
        $region32: #{tpu_custom_call.1} parent=23 // pred_fallthru
          _
      $region24: #{tpu_custom_call.1} parent=5 // pred_fallthru
        _
      %p132 = scmp.le.s32.totalorder 2, %s11
      // Predicated region
      $region33: #{tpu_custom_call.1} parent=5 // pred_check
        %p133 = pneg %p132
      $region34: #{tpu_custom_call.1} parent=5 // pred_check_branch
        %135 = sbr.rel (%p133) target = $region36
      $region35: #{tpu_custom_call.1} parent=5 // pred_region
        %s136 = ssub.s32 %s11, 2
        // Predicated region
        $region37: #{tpu_custom_call.1} parent=35 // pred_check
          %p137 = pneg %p61
        $region38: #{tpu_custom_call.1} parent=35 // pred_check_branch
          %139 = sbr.rel (%p137) target = $region40
        $region39: #{tpu_custom_call.1} parent=35 // pred_region
          %s140 = sand.u32 %s46, 1
          %s141 = scalar_lea.sflag [#allocation4], %s140
          %s142 = sand.u32 %s46, 1
          %s143 = smul.addr %s142, 8
          %s144 = scalar_lea.vmem [#allocation5], %s143
          %146 = dma.done %s141, 128
        $region40: #{tpu_custom_call.1} parent=35 // pred_fallthru
          _
      $region36: #{tpu_custom_call.1} parent=5 // pred_fallthru
        _
    $region6: #{tpu_custom_call.1} parent=1 // loop_footer
      %s15 = sadd.s32 1, %s11
    $region7: #{tpu_custom_call.1} parent=1 // loop_footer_branch
      %10 = sbr.rel target = $region3
    $region8: #{tpu_custom_call.1} parent=1 // loop_exit
      _
    %147 = vsyncpa [#allocation3], 1
    %s148 = scalar_lea.sflag [#allocation3], 1
    %149 = vsyncpa %s148, 1
    %150 = vsyncpa [#allocation4], 1
    %s151 = scalar_lea.sflag [#allocation4], 1
    %152 = vsyncpa %s151, 1

// kernel: _sgu_impl.2
$region0: #{_sgu_impl.2}
  #allocation0 [shape = 'u32[]', space=smem, size = 0x4, offset = 0x4, fixed_abs, tag = 'smem constant byte address 0x4 - core index']
  #allocation1 [shape = 'u32[72,128]{1,0:T(1,128)}', space=vmem, size = 0x9000, scoped, tag = 'internal scratch']
  %s0 = inlined_call_operand.hbm [shape: f32[8,64], index: 0, kind: input, shape index: {}]
  %s1 = inlined_call_operand.vmem [shape: f32[1,2,64], index: 1, kind: output, shape index: {}]
  %s2 = sld [smem:[#allocation0]]
  $region26: #{_sgu_impl.2} parent=0
    _
  %s4 = ssub.s32 1, %s2
  %s5 = scalar_select 0, %s4, %s2
  $region1: #{_sgu_impl.2} parent=0
    #allocation2 [shape = 'u8[4096]{0}', space=vmem, size = 0x1000, scoped, tag = 'input window, operand 0, single buffered']
    #allocation3 [shape = 's32[1]{0}', space=sflag, size = 0x4, scoped, tag = 'scoped memory for _sgu_impl.2']
    %6 = vsyncpa [#allocation3], 0
    // Predicated region
    $region2: #{_sgu_impl.2} parent=1 // pred_check
      _
    $region3: #{_sgu_impl.2} parent=1 // pred_check_branch
      %8 = sbr.rel (0) target = $region5
    $region4: #{_sgu_impl.2} parent=1 // pred_region
      %s9 = sadd.s32 0, 0
      %p10 = scmp.lt.s32.totalorder %s9, 0
      %s11 = scalar_select %p10, %s9, 0
      %13 = vsyncadd [#allocation3], 0
      %s14 = smul.addr %s11, 8
      %s15 = scalar_lea.hbm %s0, %s14
      %s17 = sshll.u32 %s15, 4
      %s18 = int_to_ptr.hbm [resolvable:$true] %s17
      %s19 = sshll.u32 [#allocation2], 4
      %s20 = int_to_ptr.vmem [resolvable:$true] %s19
      %22 = dma.hbm_to_vmem [thread:$0]  %s18, 128, %s20, [#allocation3]
    $region5: #{_sgu_impl.2} parent=1 // pred_fallthru
      _
    // Predicated region
    $region6: #{_sgu_impl.2} parent=1 // pred_check
      _
    $region7: #{_sgu_impl.2} parent=1 // pred_check_branch
      %24 = sbr.rel (0) target = $region9
    $region8: #{_sgu_impl.2} parent=1 // pred_region
      %26 = dma.done [#allocation3], 128
    $region9: #{_sgu_impl.2} parent=1 // pred_fallthru
      _
    %s27 = sadd.s32 0, 0
    %p28 = scmp.lt.s32.totalorder %s27, 0
    %s29 = scalar_select %p28, %s27, 0
    %s30 = sadd.s32 0, 0
    %p31 = scmp.eq.s32.totalorder 0, 0
    // Predicated region
    $region10: #{_sgu_impl.2} parent=1 // pred_check
      %p32 = pneg %p31
    $region11: #{_sgu_impl.2} parent=1 // pred_check_branch
      %34 = sbr.rel (%p32) target = $region13
    $region12: #{_sgu_impl.2} parent=1 // pred_region
      %vm35 = vcmask 517120
      %36 = vst.msk [vmem:[%s1] sm:$0x3] %vm35, 0.0
    $region13: #{_sgu_impl.2} parent=1 // pred_fallthru
      _
    %p37 = scmp.lt.s32.totalorder %s30, 1
    // Predicated region
    $region14: #{_sgu_impl.2} parent=1 // pred_check
      %p38 = pneg %p37
    $region15: #{_sgu_impl.2} parent=1 // pred_check_branch
      %40 = sbr.rel (%p38) target = $region17
    $region16: #{_sgu_impl.2} parent=1 // pred_region
      %v41 = vld [vmem:[#allocation2] sm:$0xff]
      %v42 = vld [vmem:[%s1] sm:$0x1]
      %vm43 = vcmask 523264
      %v44 = vsel %vm43, %v41, 0.0
      %v45 = vrot.slane %v44, 4
      %v46 = vadd.f32 %v44, %v45
      %v47 = vrot.slane %v46, 2
      %v48 = vadd.f32 %v46, %v47
      %v49 = vrot.slane %v48, 1
      %v50 = vadd.f32 %v48, %v49
      %v51 = vadd.f32 %v42, %v50
      %vm52 = vcmask 516096
      %53 = vst.msk [vmem:[%s1] sm:$0x1] %vm52, %v51
      %v54 = vld [vmem:[%s1 + $0x1] sm:$0x1]
      %v55 = vmul.f32 %v41, %v41
      %v56 = vsel %vm43, %v55, 0.0
      %v57 = vrot.slane %v56, 4
      %v58 = vadd.f32 %v56, %v57
      %v59 = vrot.slane %v58, 2
      %v60 = vadd.f32 %v58, %v59
      %v61 = vrot.slane %v60, 1
      %v62 = vadd.f32 %v60, %v61
      %v63 = vadd.f32 %v54, %v62
      %64 = vst.msk [vmem:[%s1 + $0x1] sm:$0x1] %vm52, %v63
    $region17: #{_sgu_impl.2} parent=1 // pred_fallthru
      _
    // Predicated region
    $region18: #{_sgu_impl.2} parent=1 // pred_check
      _
    $region19: #{_sgu_impl.2} parent=1 // pred_check_branch
      %66 = sbr.rel (0) target = $region21
    $region20: #{_sgu_impl.2} parent=1 // pred_region
      _
    $region21: #{_sgu_impl.2} parent=1 // pred_fallthru
      _
    // Predicated region
    $region22: #{_sgu_impl.2} parent=1 // pred_check
      _
    $region23: #{_sgu_impl.2} parent=1 // pred_check_branch
      %68 = sbr.rel (0) target = $region25
    $region24: #{_sgu_impl.2} parent=1 // pred_region
      _
    $region25: #{_sgu_impl.2} parent=1 // pred_fallthru
      _
    %69 = vsyncpa [#allocation3], 1

// kernel: _sgu_impl.3
$region0: #{_sgu_impl.3}
  #allocation0 [shape = 'u32[]', space=smem, size = 0x4, offset = 0x4, fixed_abs, tag = 'smem constant byte address 0x4 - core index']
  #allocation1 [shape = 'u32[72,128]{1,0:T(1,128)}', space=vmem, size = 0x9000, scoped, tag = 'internal scratch']
  %s0 = inlined_call_operand.vmem [shape: f32[8,64], index: 0, kind: input, shape index: {}]
  %s1 = inlined_call_operand.vmem [shape: f32[1,2,64], index: 1, kind: input, shape index: {}]
  %s2 = inlined_call_operand.vmem [shape: f32[5,32], index: 2, kind: input, shape index: {}]
  %s3 = inlined_call_operand.hbm [shape: f32[32,32], index: 3, kind: input, shape index: {}]
  %s4 = inlined_call_operand.hbm [shape: f32[8,32], index: 4, kind: output, shape index: {}]
  %s5 = sld [smem:[#allocation0]]
  $region30: #{_sgu_impl.3} parent=0
    _
  %s7 = ssub.s32 1, %s5
  %s8 = scalar_select 0, %s7, %s5
  $region1: #{_sgu_impl.3} parent=0
    #allocation2 [shape = 'u8[16384]{0}', space=vmem, size = 0x4000, scoped, tag = 'input window, operand 3, single buffered']
    #allocation3 [shape = 's32[1]{0}', space=sflag, size = 0x4, scoped, tag = 'scoped memory for _sgu_impl.3']
    #allocation4 [shape = 's32[1]{0}', space=sflag, size = 0x4, scoped, tag = 'scoped memory for _sgu_impl.3']
    #allocation5 [shape = 'u8[4096]{0}', space=vmem, size = 0x1000, scoped, tag = 'output window, operand 0, single buffered']
    %9 = vsyncpa [#allocation3], 0
    %10 = vsyncpa [#allocation4], 0
    // Predicated region
    $region2: #{_sgu_impl.3} parent=1 // pred_check
      _
    $region3: #{_sgu_impl.3} parent=1 // pred_check_branch
      %12 = sbr.rel (0) target = $region5
    $region4: #{_sgu_impl.3} parent=1 // pred_region
      _
    $region5: #{_sgu_impl.3} parent=1 // pred_fallthru
      _
    // Predicated region
    $region6: #{_sgu_impl.3} parent=1 // pred_check
      _
    $region7: #{_sgu_impl.3} parent=1 // pred_check_branch
      %14 = sbr.rel (0) target = $region9
    $region8: #{_sgu_impl.3} parent=1 // pred_region
      _
    $region9: #{_sgu_impl.3} parent=1 // pred_fallthru
      _
    // Predicated region
    $region10: #{_sgu_impl.3} parent=1 // pred_check
      _
    $region11: #{_sgu_impl.3} parent=1 // pred_check_branch
      %16 = sbr.rel (0) target = $region13
    $region12: #{_sgu_impl.3} parent=1 // pred_region
      _
    $region13: #{_sgu_impl.3} parent=1 // pred_fallthru
      _
    // Predicated region
    $region14: #{_sgu_impl.3} parent=1 // pred_check
      _
    $region15: #{_sgu_impl.3} parent=1 // pred_check_branch
      %18 = sbr.rel (0) target = $region17
    $region16: #{_sgu_impl.3} parent=1 // pred_region
      %20 = vsyncadd [#allocation3], 0
      %s21 = sshll.u32 %s3, 4
      %s22 = int_to_ptr.hbm [resolvable:$true] %s21
      %s23 = sshll.u32 [#allocation2], 4
      %s24 = int_to_ptr.vmem [resolvable:$true] %s23
      %29 = dma.hbm_to_vmem [thread:$0]  %s22, 512, %s24, [#allocation3], 128, 128, 8
    $region17: #{_sgu_impl.3} parent=1 // pred_fallthru
      _
    // Predicated region
    $region18: #{_sgu_impl.3} parent=1 // pred_check
      _
    $region19: #{_sgu_impl.3} parent=1 // pred_check_branch
      %31 = sbr.rel (0) target = $region21
    $region20: #{_sgu_impl.3} parent=1 // pred_region
      %33 = dma.done [#allocation3], 512
    $region21: #{_sgu_impl.3} parent=1 // pred_fallthru
      _
    %v34 = vld [vmem:[%s0] sm:$0xff]
    %v35 = vld [vmem:[%s1] sm:$0x3]
    %v36 = vmul.f32 %v35, 0.125
    %v37 = vmul.f32 %v36, %v36
    %v39 = vrot.slane %v37, 7
    %v41 = vsub.f32 %v36, %v39
    %v42 = vmax.f32 %v41, 0.0
    %v43 = vadd.f32 %v42, 1e-05
    %v44 = vrsqrt.pop %v43
    %v45 = vmul.f32 %v44, %v43
    %v46 = vmul.f32 %v45, %v44
    %v47 = vmul.f32 0.5, %v46
    %v48 = vsub.f32 1.5, %v47
    %v49 = vmul.f32 %v44, %v48
    %vm50 = vweird.f32 %v43
    %vm51 = vweird.f32 %v44
    %vm52 = vmor %vm50, %vm51
    %v53 = vsel %vm52, %v44, %v49
    %v54 = vld [vmem:[%s2] sm:$0x1f]
    %v55 = vperm.slane %v36, 0
    %v56 = vsub.f32 %v34, %v55
    %v57 = vperm.slane %v53, 1
    %v58 = vmul.f32 %v56, %v57
    %v59 = vperm.slane %v54, 0
    %61 = vrot.lane.b32.xlu0 %v59, 32
    %v62 = vpop.permute.xlu0 %61
    %v64 = vmul.f32 %v58, %v62
    %v65 = vperm.slane %v54, 1
    %67 = vrot.lane.b32.xlu0 %v65, 32
    %v68 = vpop.permute.xlu0 %67
    %v70 = vadd.f32 %v64, %v68
    %v71 = vperm.slane %v54, 2
    %v72 = vmul.f32 %v58, %v71
    %v73 = vperm.slane %v54, 3
    %v74 = vadd.f32 %v72, %v73
    %v75 = vld [vmem:[#allocation2] sm:$0xff]
    %v76 = vld [vmem:[#allocation2 + $0x8] sm:$0xff]
    %v77 = vld [vmem:[#allocation2 + $0x10] sm:$0xff]
    %v78 = vld [vmem:[#allocation2 + $0x18] sm:$0xff]
    %v79 = vperm.slane %v54, 4
    %81 = vrot.lane.b32.xlu0 %v70, 96
    %v82 = vpop.permute.xlu0 %81
    %vm83 = vcmask 261120
    %v84 = vsel %vm83, %v82, 0
    %v87 = vsel %vm83, %v75, 0
    %v90 = vsel %vm83, %v76, 0
    %v93 = vsel %vm83, %v77, 0
    %v96 = vsel %vm83, %v78, 0
    %98 = vmatpush.xpose.msra.mxu0 0.0
    %99 = vmatpush.xpose.msra.mxu0 0.0
    %100 = vmatpush.xpose.msra.mxu0 0.0
    %101 = vmatpush.xpose.msra.mxu0 0.0
    %102 = vmatpush.xpose.msra.mxu0 0.0
    %103 = vmatpush.xpose.msra.mxu0 0.0
    %104 = vmatpush.xpose.msra.mxu0 0.0
    %105 = vmatpush.xpose.msra.mxu0 0.0
    %106 = vmatpush.xpose.msra.mxu0 0.0
    %107 = vmatpush.xpose.msra.mxu0 0.0
    %108 = vmatpush.xpose.msra.mxu0 0.0
    %109 = vmatpush.xpose.msra.mxu0 0.0
    %110 = vmatpush.xpose.msra.mxu0 %v96
    %111 = vmatpush.xpose.msra.mxu0 %v93
    %112 = vmatpush.xpose.msra.mxu0 %v90
    %113 = vmatpush.xpose.msra.mxu0 %v87
    %114 = vmatmul.f32.gmra.mxu0 %v84
    %v115 = vpop.f32.mrf.mxu0
    %v116 = vadd.f32 %v79, %v115
    %117 = vdwg.mxu0
    %v119 = vsel %vm83, %v74, 0
    %121 = vmatpush.xpose.msra.mxu0 0.0
    %122 = vmatpush.xpose.msra.mxu0 0.0
    %123 = vmatpush.xpose.msra.mxu0 0.0
    %124 = vmatpush.xpose.msra.mxu0 0.0
    %125 = vmatpush.xpose.msra.mxu0 0.0
    %126 = vmatpush.xpose.msra.mxu0 0.0
    %127 = vmatpush.xpose.msra.mxu0 0.0
    %128 = vmatpush.xpose.msra.mxu0 0.0
    %129 = vmatpush.xpose.msra.mxu0 0.0
    %130 = vmatpush.xpose.msra.mxu0 0.0
    %131 = vmatpush.xpose.msra.mxu0 0.0
    %132 = vmatpush.xpose.msra.mxu0 0.0
    %133 = vmatpush.xpose.msra.mxu0 %v96
    %134 = vmatpush.xpose.msra.mxu0 %v93
    %135 = vmatpush.xpose.msra.mxu0 %v90
    %136 = vmatpush.xpose.msra.mxu0 %v87
    %137 = vmatmul.f32.gmra.mxu0 %v119
    %v138 = vpop.f32.mrf.mxu0
    %v139 = vadd.f32 %v79, %v138
    %140 = vdwg.mxu0
    %v141 = vmul.f32 %v34, %v116
    %143 = vrot.lane.b32.xlu0 %v139, 32
    %v144 = vpop.permute.xlu0 %143
    %v146 = vmul.f32 %v34, %v144
    %148 = vrot.lane.b32.xlu0 %v146, 96
    %v149 = vpop.permute.xlu0 %148
    %v151 = vadd.f32 %v141, %v149
    %152 = vst.msk [vmem:[#allocation5] sm:$0xff] %vm83, %v151
    // Predicated region
    $region22: #{_sgu_impl.3} parent=1 // pred_check
      _
    $region23: #{_sgu_impl.3} parent=1 // pred_check_branch
      %154 = sbr.rel (0) target = $region25
    $region24: #{_sgu_impl.3} parent=1 // pred_region
      %156 = vsyncadd [#allocation4], 0
      %s158 = sshll.u32 [#allocation5], 4
      %s159 = int_to_ptr.vmem [resolvable:$true] %s158
      %s160 = sshll.u32 %s4, 4
      %s161 = int_to_ptr.hbm [resolvable:$true] %s160
      %163 = dma.vmem_to_hbm [thread:$0]  %s159, 128, %s161, [#allocation4]
    $region25: #{_sgu_impl.3} parent=1 // pred_fallthru
      _
    // Predicated region
    $region26: #{_sgu_impl.3} parent=1 // pred_check
      _
    $region27: #{_sgu_impl.3} parent=1 // pred_check_branch
      %165 = sbr.rel (0) target = $region29
    $region28: #{_sgu_impl.3} parent=1 // pred_region
      %167 = dma.done [#allocation4], 128
    $region29: #{_sgu_impl.3} parent=1 // pred_fallthru
      _
    %168 = vsyncpa [#allocation3], 1
    %169 = vsyncpa [#allocation4], 1

</llo_original>
